<compile_context>
chip_gen: v6e
topology: v6e:2x2x1
jax: 0.10.0
libtpu: 0.0.40
codegen_flags: <defaults>
</compile_context>

<pallas_src>
import functools

import jax
import jax.numpy as jnp
import numpy as np
from jax import lax
from jax.experimental import pallas as pl
from jax.experimental.pallas import tpu as pltpu

LANE = 128


def _attn_kernel(x_ref, w_ref, b_ref, o_ref, qkv_ref, *, tq, dp):
    """One (batch, query-tile) grid step.

    x_ref   : (S, D)       full sequence for this batch (batch dim squeezed)
    w_ref   : (D, 3*Dp)    fused, lane-padded [Wq*scale | Wk | Wv]
    b_ref   : (1, 3*Dp)    fused, lane-padded [bq*scale | bk | bv] (f32)
    o_ref   : (TQ, Dp)     output tile (lane-dense, padded feature dim)
    qkv_ref : (S, 3*Dp)    VMEM scratch (input dtype): fused QKV projection,
                           computed once per batch (qt == 0), reused after.
    """
    qt = pl.program_id(1)

    # Fused QKV projection for the whole sequence, once per batch.
    # Accumulate in f32, store in the (possibly narrower) scratch dtype.
    @pl.when(qt == 0)
    def _():
        acc = jnp.dot(x_ref[...], w_ref[...],
                      preferred_element_type=jnp.float32) + b_ref[...]
        qkv_ref[...] = acc.astype(qkv_ref.dtype)

    row0 = pl.multiple_of(qt * tq, tq)
    q = qkv_ref[pl.ds(row0, tq), 0:dp]           # (TQ, Dp), scale pre-folded
    k = qkv_ref[:, dp:2 * dp]                    # (S, Dp)
    v = qkv_ref[:, 2 * dp:3 * dp]                # (S, Dp)

    # scores = Q @ K^T : contract on the last dim of both operands so the MXU
    # consumes K directly (no XLU transpose, no transposed VMEM copy).
    scores = lax.dot_general(
        q, k, dimension_numbers=(((1,), (1,)), ((), ())),
        preferred_element_type=jnp.float32)      # (TQ, S)

    # Softmax along keys (max-subtracted; exact — the full key row is present).
    # Normalize AFTER the PV matmul: scaling the (TQ, Dp) context instead of
    # the (TQ, S) probabilities drops a (TQ x S) multiply and temporary.
    scores = scores - jnp.max(scores, axis=-1, keepdims=True)
    p = jnp.exp(scores)                                       # (TQ, S) f32
    l = jnp.sum(p, axis=-1, keepdims=True)                    # (TQ, 1)

    ctx = jnp.dot(p.astype(v.dtype), v,
                  preferred_element_type=jnp.float32)         # (TQ, Dp)
    ctx = ctx * pl.reciprocal(l)     # exact: only (TQ, 1) reciprocals needed
    o_ref[...] = ctx.astype(o_ref.dtype)


def _vmem_capacity_bytes():
    try:
        return int(pltpu.get_tpu_info().vmem_capacity_bytes)
    except Exception:
        return 64 * 1024 * 1024      # conservative: v7x per-TensorCore VMEM


def _estimate_vmem_bytes(S, D, Dp, tq, itemsize):
    """Rough per-step working-set estimate (double-buffered pipeline I/O)."""
    x_tile = 2 * S * D * itemsize              # input x tile (x2 buffers)
    wb = 2 * (D + 1) * 3 * Dp * 4              # fused weights + bias (<= f32)
    scratch = S * 3 * Dp * itemsize            # persistent QKV scratch
    out_tile = 2 * tq * Dp * itemsize          # output tile (x2 buffers)
    temps = 2 * tq * S * 4 + 2 * tq * Dp * 4   # scores/exp + ctx f32 temps
    return x_tile + wb + scratch + out_tile + temps


def _pick_query_tile(S, D, Dp, itemsize, budget_bytes):
    candidates = [t for t in (1024, 512, 256, 128, 64, 32, 16, 8)
                  if t <= S and S % t == 0]
    if not candidates:
        candidates = [S]                        # full-extent block is legal
    for t in candidates:                        # largest tile that fits
        if _estimate_vmem_bytes(S, D, Dp, t, itemsize) <= budget_bytes:
            return t
    return candidates[-1]


def scaled_dot_product_attention_with_seq(x, wq, wk, wv, bq, bk, bv, hidden_dim):
    """x: (B, S, 2*hidden_dim) -> (B, S, 2*hidden_dim)."""
    B, S, D = x.shape
    assert D == 2 * hidden_dim
    scale = 1.0 / np.sqrt(D)    # matches torch: / np.sqrt(hidden_dim * 2)

    compute_dtype = x.dtype
    itemsize = jnp.dtype(compute_dtype).itemsize

    # Lane-dense feature dim: pad D up to a multiple of 128 with zeros.
    # Padded columns of Q/K/V are identically zero, so scores/softmax/context
    # on the first D columns are unchanged; the wrapper slices them back out.
    Dp = max(LANE, ((D + LANE - 1) // LANE) * LANE)

    def pad_w(w):   # (D, D) -> (D, Dp)
        return jnp.pad(w, ((0, 0), (0, Dp - D)))

    def pad_b(b):   # (D,) -> (Dp,)
        return jnp.pad(b, (0, Dp - D))

    # Fuse the three projections into one matmul; fold the attention scale
    # into the Q weights/bias so it costs nothing inside the kernel.
    w_qkv = jnp.concatenate(
        [pad_w(wq * scale), pad_w(wk), pad_w(wv)],
        axis=1).astype(compute_dtype)                          # (D, 3*Dp)
    b_qkv = jnp.concatenate(
        [pad_b(bq * scale), pad_b(bk), pad_b(bv)]
    ).reshape(1, 3 * Dp).astype(jnp.float32)    # bias added to f32 accumulator

    # Generation-aware tiling / VMEM limit.
    capacity = _vmem_capacity_bytes()
    budget = min(capacity // 2, 64 << 20)       # ~half of physical VMEM
    TQ = _pick_query_tile(S, D, Dp, itemsize, budget)

    est = _estimate_vmem_bytes(S, D, Dp, TQ, itemsize)
    vmem_limit = None
    if est > (12 << 20):    # exceeds the most conservative scoped default
        vmem_limit = int(min(est * 3 // 2 + (4 << 20),
                             max(capacity - (8 << 20), 16 << 20)))

    kernel = functools.partial(_attn_kernel, tq=TQ, dp=Dp)

    out_padded = pl.pallas_call(
        kernel,
        out_shape=jax.ShapeDtypeStruct((B, S, Dp), x.dtype),
        grid_spec=pltpu.PrefetchScalarGridSpec(
            num_scalar_prefetch=0,
            grid=(B, S // TQ),
            in_specs=[
                # Full sequence per batch; block index is constant across the
                # query-tile axis, so it is DMA'd once per batch.
                pl.BlockSpec((pl.Squeezed(), S, D), lambda b, q: (b, 0, 0)),
                # Weights/bias have constant index maps (fetched once); their
                # second pipeline buffer is small at these D, so left default.
                pl.BlockSpec((D, 3 * Dp), lambda b, q: (0, 0)),
                pl.BlockSpec((1, 3 * Dp), lambda b, q: (0, 0)),
            ],
            out_specs=pl.BlockSpec((pl.Squeezed(), TQ, Dp),
                                   lambda b, q: (b, q, 0)),
            scratch_shapes=[pltpu.VMEM((S, 3 * Dp), compute_dtype)],
        ),
        compiler_params=pltpu.CompilerParams(
            # Batch axis -> megacore parallel; query-tile axis must stay
            # sequential ("arbitrary") because the QKV scratch is written at
            # qt == 0 and reused by all later query tiles of that batch.
            dimension_semantics=("parallel", "arbitrary"),
            vmem_limit_bytes=vmem_limit),
    )(x, w_qkv, b_qkv)

    return out_padded[..., :D]


def _reference(x, wq, wk, wv, bq, bk, bv, hidden_dim):
    D = 2 * hidden_dim
    q = x @ wq + bq
    k = x @ wk + bk
    v = x @ wv + bv
    s = jnp.einsum("bqd,bkd->bqk", q, k) / np.sqrt(D)
    w = jax.nn.softmax(s, axis=-1)
    return jnp.einsum("bqk,bkd->bqd", w, v)


if __name__ == "__main__":
    hidden_dim = 16
    D = hidden_dim * 2     # 32
    B, S = 2, 8

    key = jax.random.PRNGKey(0)
    kx, kq, kk, kv, kbq, kbk, kbv = jax.random.split(key, 7)

    x = jax.random.normal(kx, (B, S, D), dtype=jnp.float32)

    # deterministic parameter init (uniform like nn.Linear default range)
    bound = 1.0 / np.sqrt(D)
    wq = jax.random.uniform(kq, (D, D), jnp.float32, -bound, bound)
    wk = jax.random.uniform(kk, (D, D), jnp.float32, -bound, bound)
    wv = jax.random.uniform(kv, (D, D), jnp.float32, -bound, bound)
    bq = jax.random.uniform(kbq, (D,), jnp.float32, -bound, bound)
    bk = jax.random.uniform(kbk, (D,), jnp.float32, -bound, bound)
    bv = jax.random.uniform(kbv, (D,), jnp.float32, -bound, bound)

    out = scaled_dot_product_attention_with_seq(
        x, wq, wk, wv, bq, bk, bv, hidden_dim)
    out = jax.block_until_ready(out)

    ref = _reference(x, wq, wk, wv, bq, bk, bv, hidden_dim)
    # Tolerance leaves headroom for TPU default matmul precision; the softmax
    # reciprocal is now exact.
    np.testing.assert_allclose(np.asarray(out), np.asarray(ref),
                               rtol=5e-3, atol=5e-3)
    print("KERNEL_OK")
</pallas_src>

<mosaic_0001>
module attributes {stable_mosaic.version = 11 : i64} {
  func.func @_attn_kernel(%arg0: i32, %arg1: i32, %arg2: memref<1x8x32xf32, #tpu.memory_space<vmem>>, %arg3: memref<32x384xf32, #tpu.memory_space<vmem>>, %arg4: memref<1x384xf32, #tpu.memory_space<vmem>>, %arg5: memref<1x8x128xf32, #tpu.memory_space<vmem>>, %arg6: memref<8x384xf32, #tpu.memory_space<vmem>>) attributes {dimension_semantics = [#tpu.dimension_semantics<parallel>, #tpu.dimension_semantics<arbitrary>], iteration_bounds = array<i64: 2, 1>, scalar_prefetch = 0 : i64, scratch_operands = 1 : i64, tpu.core_type = #tpu.core_type<tc>, window_params = [{transform_indices = @transform_0, window_bounds = array<i64: 1, 8, 32>}, {pipeline_mode = #tpu.pipeline_mode<synchronous>, transform_indices = @transform_1, window_bounds = array<i64: 32, 384>}, {pipeline_mode = #tpu.pipeline_mode<synchronous>, transform_indices = @transform_2, window_bounds = array<i64: 1, 384>}, {transform_indices = @transform_3, window_bounds = array<i64: 1, 8, 128>}]} {
    %c0_i32 = arith.constant 0 : i32
    %0 = arith.cmpi eq, %arg1, %c0_i32 : i32
    %1 = arith.extui %0 : i1 to i32
    %c0_i32_0 = arith.constant 0 : i32
    %2 = arith.cmpi ne, %1, %c0_i32_0 : i32
    scf.if %2 {
      %c0_9 = arith.constant 0 : index
      %c0_10 = arith.constant 0 : index
      %c0_11 = arith.constant 0 : index
      %24 = vector.load %arg2[%c0_9, %c0_10, %c0_11] : memref<1x8x32xf32, #tpu.memory_space<vmem>>, vector<1x8x32xf32>
      %25 = vector.shape_cast %24 : vector<1x8x32xf32> to vector<8x32xf32>
      %c0_12 = arith.constant 0 : index
      %c0_13 = arith.constant 0 : index
      %26 = vector.load %arg3[%c0_12, %c0_13] : memref<32x384xf32, #tpu.memory_space<vmem>>, vector<32x384xf32>
      %cst_14 = arith.constant dense<0.000000e+00> : vector<8x384xf32>
      %27 = tpu.matmul %25, %26, %cst_14 {dimension_numbers = #tpu.dot_dimension_numbers<[1], [0], [0], [1], [0, 0, 1, 1], [], []>} : vector<8x32xf32>, vector<32x384xf32>, vector<8x384xf32> -> vector<8x384xf32>
      %c0_15 = arith.constant 0 : index
      %c0_16 = arith.constant 0 : index
      %28 = vector.load %arg4[%c0_15, %c0_16] : memref<1x384xf32, #tpu.memory_space<vmem>>, vector<1x384xf32>
      %29 = vector.broadcast %28 : vector<1x384xf32> to vector<8x384xf32>
      %30 = arith.addf %27, %29 : vector<8x384xf32>
      %c0_17 = arith.constant 0 : index
      %c0_18 = arith.constant 0 : index
      %31 = vector.load %arg6[%c0_17, %c0_18] : memref<8x384xf32, #tpu.memory_space<vmem>>, vector<8x384xf32>
      tpu.vector_store %arg6[%c0_17, %c0_18], %30 {strides = array<i32>} : memref<8x384xf32, #tpu.memory_space<vmem>>, vector<8x384xf32>,
    } else {
    }
    %c8_i32 = arith.constant 8 : i32
    %3 = arith.muli %arg1, %c8_i32 : i32
    %4 = tpu.assume_multiple %3, 8 : i32
    %5 = arith.index_cast %4 : i32 to index
    %c0 = arith.constant 0 : index
    %6 = vector.load %arg6[%5, %c0] : memref<8x384xf32, #tpu.memory_space<vmem>>, vector<8x128xf32>
    %c0_1 = arith.constant 0 : index
    %c128 = arith.constant 128 : index
    %7 = vector.load %arg6[%c0_1, %c128] : memref<8x384xf32, #tpu.memory_space<vmem>>, vector<8x128xf32>
    %c0_2 = arith.constant 0 : index
    %c256 = arith.constant 256 : index
    %8 = vector.load %arg6[%c0_2, %c256] : memref<8x384xf32, #tpu.memory_space<vmem>>, vector<8x128xf32>
    %cst = arith.constant dense<0.000000e+00> : vector<8x8xf32>
    %9 = tpu.matmul %6, %7, %cst {dimension_numbers = #tpu.dot_dimension_numbers<[1], [1], [0], [0], [0, 0, 1, 0], [], []>} : vector<8x128xf32>, vector<8x128xf32>, vector<8x8xf32> -> vector<8x8xf32>
    %cst_3 = arith.constant dense<0xFF800000> : vector<8xf32>
    %10 = vector.multi_reduction <maximumf>, %9, %cst_3 [1] : vector<8x8xf32> to vector<8xf32>
    %11 = vector.shape_cast %10 : vector<8xf32> to vector<8x1xf32>
    %12 = vector.broadcast %11 : vector<8x1xf32> to vector<8x8xf32>
    %13 = arith.subf %9, %12 : vector<8x8xf32>
    %14 = math.exp %13 : vector<8x8xf32>
    %cst_4 = arith.constant dense<0.000000e+00> : vector<8xf32>
    %15 = vector.multi_reduction <add>, %14, %cst_4 [1] : vector<8x8xf32> to vector<8xf32>
    %16 = vector.shape_cast %15 : vector<8xf32> to vector<8x1xf32>
    %cst_5 = arith.constant dense<0.000000e+00> : vector<8x128xf32>
    %17 = tpu.matmul %14, %8, %cst_5 {dimension_numbers = #tpu.dot_dimension_numbers<[1], [0], [0], [1], [0, 0, 1, 1], [], []>} : vector<8x8xf32>, vector<8x128xf32>, vector<8x128xf32> -> vector<8x128xf32>
    %18 = tpu.reciprocal %16 : vector<8x1xf32> -> vector<8x1xf32>
    %19 = vector.broadcast %18 : vector<8x1xf32> to vector<8x128xf32>
    %20 = arith.mulf %17, %19 : vector<8x128xf32>
    %c0_6 = arith.constant 0 : index
    %c0_7 = arith.constant 0 : index
    %c0_8 = arith.constant 0 : index
    %21 = vector.load %arg5[%c0_6, %c0_7, %c0_8] : memref<1x8x128xf32, #tpu.memory_space<vmem>>, vector<1x8x128xf32>
    %22 = vector.shape_cast %21 : vector<1x8x128xf32> to vector<8x128xf32>
    %23 = vector.shape_cast %20 : vector<8x128xf32> to vector<1x8x128xf32>
    tpu.vector_store %arg5[%c0_6, %c0_7, %c0_8], %23 {strides = array<i32>} : memref<1x8x128xf32, #tpu.memory_space<vmem>>, vector<1x8x128xf32>,
    return
  }
  func.func @transform_0(%arg0: i32, %arg1: i32) -> (i32, i32, i32) {
    %c0_i32 = arith.constant 0 : i32
    %c0_i32_0 = arith.constant 0 : i32
    %c0_i32_1 = arith.constant 0 : i32
    return %arg0, %c0_i32, %c0_i32_0 : i32, i32, i32
  }
  func.func @transform_1(%arg0: i32, %arg1: i32) -> (i32, i32) {
    %c0_i32 = arith.constant 0 : i32
    %c0_i32_0 = arith.constant 0 : i32
    %c0_i32_1 = arith.constant 0 : i32
    return %c0_i32, %c0_i32_0 : i32, i32
  }
  func.func @transform_2(%arg0: i32, %arg1: i32) -> (i32, i32) {
    %c0_i32 = arith.constant 0 : i32
    %c0_i32_0 = arith.constant 0 : i32
    %c0_i32_1 = arith.constant 0 : i32
    return %c0_i32, %c0_i32_0 : i32, i32
  }
  func.func @transform_3(%arg0: i32, %arg1: i32) -> (i32, i32, i32) {
    %c0_i32 = arith.constant 0 : i32
    %c0_i32_0 = arith.constant 0 : i32
    return %arg0, %arg1, %c0_i32 : i32, i32, i32
  }
}

</mosaic_0001>

<llo_original>
// kernel: tpu_custom_call.1
$region0: #{tpu_custom_call.1}
  #allocation0 [shape = 'u32[]', space=smem, size = 0x4, offset = 0x4, fixed_abs, tag = 'smem constant byte address 0x4 - core index']
  #allocation1 [shape = 'u32[144,128]{1,0:T(1,128)}', space=vmem, size = 0x12000, scoped, tag = 'internal scratch']
  #allocation2 [shape = 'f32[8,384]{1,0:T(8,128)}', space=vmem, size = 0x3000, scoped, tag = 'scratch operand']
  %s0 = inlined_call_operand.hbm [shape: f32[2,8,32], index: 0, kind: input, shape index: {}]
  %s1 = inlined_call_operand.hbm [shape: f32[32,384], index: 1, kind: input, shape index: {}]
  %s2 = inlined_call_operand.vmem [shape: f32[1,384], index: 2, kind: input, shape index: {}]
  %s3 = inlined_call_operand.hbm [shape: f32[2,8,128], index: 3, kind: output, shape index: {}]
  %s4 = sld [smem:[#allocation0]]
  $region57: #{tpu_custom_call.1} parent=0
    _
  %s6 = ssub.s32 1, %s4
  %s7 = scalar_select 0, %s6, %s4
  $region1: #{tpu_custom_call.1} parent=0
    #allocation3 [shape = 'u8[8192]{0}', space=vmem, size = 0x2000, scoped, tag = 'input window, operand 0']
    #allocation4 [shape = 's32[2]{0}', space=sflag, size = 0x8, scoped, tag = 'scoped memory for tpu_custom_call.1']
    #allocation5 [shape = 's32[2]{0}', space=sflag, size = 0x8, scoped, tag = 'scoped memory for tpu_custom_call.1']
    #allocation6 [shape = 'u8[49152]{0}', space=vmem, size = 0xc000, scoped, tag = 'input window, operand 1, single buffered']
    #allocation7 [shape = 's32[1]{0}', space=sflag, size = 0x4, scoped, tag = 'scoped memory for tpu_custom_call.1']
    #allocation8 [shape = 'u8[8192]{0}', space=vmem, size = 0x2000, scoped, tag = 'output window, operand 0']
    %8 = vsyncpa [#allocation4], 0
    %s9 = scalar_lea.sflag [#allocation4], 1
    %10 = vsyncpa %s9, 0
    %11 = vsyncpa [#allocation7], 0
    %12 = vsyncpa [#allocation5], 0
    %s13 = scalar_lea.sflag [#allocation5], 1
    %14 = vsyncpa %s13, 0
    loop: start=0, step=1, limit=4
    $region2: #{tpu_custom_call.1} parent=1 // loop_pre_header
      _
    $region3: #{tpu_custom_call.1} parent=1 // loop_header
      %s16 = sphi 0, %s20
      %p17 = scmp.ge.s32.totalorder %s16, 4
      %s23 = sphi 0, %s35
      %s24 = sphi 0, %s31
      %s25 = sphi 0, %s23
      %s26 = sphi 0, %s24
      %s27 = sphi 0, %s25
      %s28 = sphi 0, %s26
      %s38 = sphi 0, %s40
      %s41 = sphi 0, %s38
      %s42 = sphi 0, %s41
      %s58 = sphi 0, %s42
      %s62 = sphi 0, %s62
      %s64 = sphi 0, %s62
      %s65 = sphi 0, %s64
      %s79 = sphi 0, %s65
      %s83 = sphi 0, %s83
      %s85 = sphi 0, %s83
      %s86 = sphi 0, %s85
      %s100 = sphi 0, %s86
      %s108 = sphi 0, %s110
      %s111 = sphi 0, %s108
      %s112 = sphi 0, %s111
      %s128 = sphi 0, %s112
    $region4: #{tpu_custom_call.1} parent=1 // loop_header_branch
      %19 = sbr.rel (%p17) target = $region8
    $region5: #{tpu_custom_call.1} parent=1 // loop_body
      %s21 = ssub.s32 %s16, 1
      %s22 = ssub.s32 %s16, 2
      %s29 = sadd.s32 1, %s24
      %p30 = scmp.ge.s32.totalorder %s29, 1
      %s31 = scalar_select %p30, 0, %s29
      %s32 = sadd.s32 1, %s23
      %s33 = scalar_select %p30, %s32, %s23
      %p34 = scmp.ge.s32.totalorder %s33, 2
      %s35 = scalar_select %p34, 0, %s33
      %s36 = ssub.s32 %s23, %s35
      %p37 = scmp.eq.s32.totalorder %s36, 0
      %s39 = sadd.s32 %s38, 1
      %s40 = scalar_select %p37, %s38, %s39
      %p43 = pneg %p37
      %p44 = scmp.eq.s32.totalorder %s16, 1
      %p45 = por %p43, %p44
      %p46 = scmp.ne.s32.totalorder %s38, %s41
      %p47 = scmp.eq.s32.totalorder %s16, 0
      %p48 = por %p46, %p47
      %p49 = scmp.ne.s32.totalorder %s38, %s41
      %p50 = scmp.eq.s32.totalorder %s21, 1
      %p51 = por %p49, %p50
      %p52 = scmp.ne.s32.totalorder %s41, %s42
      %p53 = scmp.eq.s32.totalorder %s21, 0
      %p54 = por %p52, %p53
      %p55 = scmp.ne.s32.totalorder %s41, %s42
      %p56 = scmp.eq.s32.totalorder %s22, 1
      %p57 = por %p55, %p56
      %p59 = scmp.ne.s32.totalorder %s42, %s58
      %p60 = scmp.eq.s32.totalorder %s22, 0
      %p61 = por %p59, %p60
      %s63 = sadd.s32 %s62, 1
      %p66 = scmp.eq.s32.totalorder %s16, 1
      %p67 = scmp.ne.s32.totalorder %s62, %s64
      %p68 = scmp.eq.s32.totalorder %s16, 0
      %p69 = por %p67, %p68
      %p70 = scmp.ne.s32.totalorder %s62, %s64
      %p71 = scmp.eq.s32.totalorder %s21, 1
      %p72 = por %p70, %p71
      %p73 = scmp.ne.s32.totalorder %s64, %s65
      %p74 = scmp.eq.s32.totalorder %s21, 0
      %p75 = por %p73, %p74
      %p76 = scmp.ne.s32.totalorder %s64, %s65
      %p77 = scmp.eq.s32.totalorder %s22, 1
      %p78 = por %p76, %p77
      %p80 = scmp.ne.s32.totalorder %s65, %s79
      %p81 = scmp.eq.s32.totalorder %s22, 0
      %p82 = por %p80, %p81
      %s84 = sadd.s32 %s83, 1
      %p87 = scmp.eq.s32.totalorder %s16, 1
      %p88 = scmp.ne.s32.totalorder %s83, %s85
      %p89 = scmp.eq.s32.totalorder %s16, 0
      %p90 = por %p88, %p89
      %p91 = scmp.ne.s32.totalorder %s83, %s85
      %p92 = scmp.eq.s32.totalorder %s21, 1
      %p93 = por %p91, %p92
      %p94 = scmp.ne.s32.totalorder %s85, %s86
      %p95 = scmp.eq.s32.totalorder %s21, 0
      %p96 = por %p94, %p95
      %p97 = scmp.ne.s32.totalorder %s85, %s86
      %p98 = scmp.eq.s32.totalorder %s22, 1
      %p99 = por %p97, %p98
      %p101 = scmp.ne.s32.totalorder %s86, %s100
      %p102 = scmp.eq.s32.totalorder %s22, 0
      %p103 = por %p101, %p102
      %s104 = ssub.s32 %s23, %s35
      %s105 = ssub.s32 %s24, %s31
      %s106 = sor.u32 %s104, %s105
      %p107 = scmp.eq.s32.totalorder %s106, 0
      %s109 = sadd.s32 %s108, 1
      %s110 = scalar_select %p107, %s108, %s109
      %p113 = pneg %p107
      %p114 = scmp.eq.s32.totalorder %s16, 1
      %p115 = por %p113, %p114
      %p116 = scmp.ne.s32.totalorder %s108, %s111
      %p117 = scmp.eq.s32.totalorder %s16, 0
      %p118 = por %p116, %p117
      %p119 = scmp.ne.s32.totalorder %s108, %s111
      %p120 = scmp.eq.s32.totalorder %s21, 1
      %p121 = por %p119, %p120
      %p122 = scmp.ne.s32.totalorder %s111, %s112
      %p123 = scmp.eq.s32.totalorder %s21, 0
      %p124 = por %p122, %p123
      %p125 = scmp.ne.s32.totalorder %s111, %s112
      %p126 = scmp.eq.s32.totalorder %s22, 1
      %p127 = por %p125, %p126
      %p129 = scmp.ne.s32.totalorder %s112, %s128
      %p130 = scmp.eq.s32.totalorder %s22, 0
      %p131 = por %p129, %p130
      %p132 = scmp.le.s32.totalorder 1, %s16
      %p133 = scmp.lt.s32.totalorder %s16, 3
      %p134 = pnand %p132, %p133
      %p135 = pneg %p134
      // Predicated region
      $region9: #{tpu_custom_call.1} parent=5 // pred_check
        _
      $region10: #{tpu_custom_call.1} parent=5 // pred_check_branch
        %137 = sbr.rel (%p134) target = $region12
      $region11: #{tpu_custom_call.1} parent=5 // pred_region
        %s138 = ssub.s32 %s16, 1
        // Predicated region
        $region13: #{tpu_custom_call.1} parent=11 // pred_check
          %p139 = pneg %p75
        $region14: #{tpu_custom_call.1} parent=11 // pred_check_branch
          %141 = sbr.rel (%p139) target = $region16
        $region15: #{tpu_custom_call.1} parent=11 // pred_region
          %s143 = ssub.s32 1536, 1536
          %144 = vsyncadd [#allocation7], %s143
          %s145 = sshll.u32 [#allocation6], 4
          %s146 = int_to_ptr.vmem [resolvable:$true] %s145
          %151 = dma.hbm_to_vmem [thread:$0]  %s1, 1536, %s146, [#allocation7], 384, 384, 24
        $region16: #{tpu_custom_call.1} parent=11 // pred_fallthru
          _
        // Predicated region
        $region17: #{tpu_custom_call.1} parent=11 // pred_check
          %p152 = pneg %p96
        $region18: #{tpu_custom_call.1} parent=11 // pred_check_branch
          %154 = sbr.rel (%p152) target = $region20
        $region19: #{tpu_custom_call.1} parent=11 // pred_region
          _
        $region20: #{tpu_custom_call.1} parent=11 // pred_fallthru
          _
      $region12: #{tpu_custom_call.1} parent=5 // pred_fallthru
        _
      %p155 = scmp.lt.s32.totalorder %s16, 2
      // Predicated region
      $region21: #{tpu_custom_call.1} parent=5 // pred_check
        %p156 = pneg %p155
      $region22: #{tpu_custom_call.1} parent=5 // pred_check_branch
        %158 = sbr.rel (%p156) target = $region24
      $region23: #{tpu_custom_call.1} parent=5 // pred_region
        // Predicated region
        $region25: #{tpu_custom_call.1} parent=23 // pred_check
          %p159 = pneg %p48
        $region26: #{tpu_custom_call.1} parent=23 // pred_check_branch
          %161 = sbr.rel (%p159) target = $region28
        $region27: #{tpu_custom_call.1} parent=23 // pred_region
          %s162 = sand.u32 %s38, 1
          %s163 = scalar_lea.sflag [#allocation4], %s162
          %s164 = sand.u32 %s38, 1
          %s165 = smul.addr %s164, 8
          %s166 = scalar_lea.vmem [#allocation3], %s165
          %s168 = ssub.s32 128, 128
          %169 = vsyncadd %s163, %s168
          %s170 = smul.addr %s23, 128
          %s171 = scalar_lea.hbm %s0, %s170
          %s173 = sshll.u32 %s166, 4
          %s174 = int_to_ptr.vmem [resolvable:$true] %s173
          %176 = dma.hbm_to_vmem [thread:$0]  %s171, 128, %s174, %s163
        $region28: #{tpu_custom_call.1} parent=23 // pred_fallthru
          _
      $region24: #{tpu_custom_call.1} parent=5 // pred_fallthru
        _
      %p177 = scmp.le.s32.totalorder 1, %s16
      %p178 = scmp.lt.s32.totalorder %s16, 3
      %p179 = pnand %p177, %p178
      %p180 = pneg %p179
      // Predicated region
      $region29: #{tpu_custom_call.1} parent=5 // pred_check
        _
      $region30: #{tpu_custom_call.1} parent=5 // pred_check_branch
        %182 = sbr.rel (%p179) target = $region32
      $region31: #{tpu_custom_call.1} parent=5 // pred_region
        %s183 = ssub.s32 %s16, 1
        %s184 = sand.u32 %s41, 1
        %s185 = scalar_lea.sflag [#allocation4], %s184
        %s186 = sand.u32 %s41, 1
        %s187 = smul.addr %s186, 8
        %s188 = scalar_lea.vmem [#allocation3], %s187
        // Predicated region
        $region33: #{tpu_custom_call.1} parent=31 // pred_check
          %p189 = pneg %p54
        $region34: #{tpu_custom_call.1} parent=31 // pred_check_branch
          %191 = sbr.rel (%p189) target = $region36
        $region35: #{tpu_custom_call.1} parent=31 // pred_region
          %192 = dma.done %s185, 128
        $region36: #{tpu_custom_call.1} parent=31 // pred_fallthru
          _
        // Predicated region
        $region37: #{tpu_custom_call.1} parent=31 // pred_check
          %p193 = pneg %p75
        $region38: #{tpu_custom_call.1} parent=31 // pred_check_branch
          %195 = sbr.rel (%p193) target = $region40
        $region39: #{tpu_custom_call.1} parent=31 // pred_region
          %196 = dma.done [#allocation7], 1536
        $region40: #{tpu_custom_call.1} parent=31 // pred_fallthru
          _
        %s197 = sand.u32 %s41, 1
        %s198 = scalar_lea.sflag [#allocation4], %s197
        %s199 = sand.u32 %s41, 1
        %s200 = smul.addr %s199, 8
        %s201 = scalar_lea.vmem [#allocation3], %s200
        %p202 = pneg %p54
        %p203 = pneg %p51
        %p204 = pneg %p75
        %p205 = pneg %p72
        %p206 = pneg %p96
        %p207 = pneg %p93
        %p208 = pneg %p124
        %p209 = pneg %p121
        %s210 = sand.u32 %s111, 1
        %s211 = scalar_lea.sflag [#allocation5], %s210
        %s212 = sand.u32 %s111, 1
        %s213 = smul.addr %s212, 8
        %s214 = scalar_lea.vmem [#allocation8], %s213
        %p215 = scmp.eq.s32.totalorder %s26, 0
        // Predicated region
        $region41: #{tpu_custom_call.1} parent=31 // pred_check
          %p216 = pneg %p215
        $region42: #{tpu_custom_call.1} parent=31 // pred_check_branch
          %218 = sbr.rel (%p216) target = $region44
        $region43: #{tpu_custom_call.1} parent=31 // pred_region
          %v219 = vld [vmem:[%s188] sm:$0xff]
          %v220 = vld [vmem:[#allocation6] sm:$0xff]
          %v221 = vld [vmem:[#allocation6 + $0x8] sm:$0xff]
          %v222 = vld [vmem:[#allocation6 + $0x10] sm:$0xff]
          %v223 = vld [vmem:[#allocation6 + $0x18] sm:$0xff]
          %v224 = vld [vmem:[#allocation6 + $0x20] sm:$0xff]
          %v225 = vld [vmem:[#allocation6 + $0x28] sm:$0xff]
          %v226 = vld [vmem:[#allocation6 + $0x30] sm:$0xff]
          %v227 = vld [vmem:[#allocation6 + $0x38] sm:$0xff]
          %v228 = vld [vmem:[#allocation6 + $0x40] sm:$0xff]
          %v229 = vld [vmem:[#allocation6 + $0x48] sm:$0xff]
          %v230 = vld [vmem:[#allocation6 + $0x50] sm:$0xff]
          %v231 = vld [vmem:[#allocation6 + $0x58] sm:$0xff]
          %v232 = vld [vmem:[%s2] sm:$0x7]
          %v234 = vlaneseq
          %v235 = vshrl.u32 %v234, 7
          %v236 = vsub.s32 0, %v235
          %v237 = vrot.slane %v232, %v236
          %v238 = vlaneseq
          %v239 = vshrl.u32 %v238, 7
          %v240 = vsub.s32 1, %v239
          %v241 = vrot.slane %v232, %v240
          %v242 = vlaneseq
          %v243 = vshrl.u32 %v242, 7
          %v244 = vsub.s32 2, %v243
          %v245 = vrot.slane %v232, %v244
          %vm249 = vcmask 261120
          %v251 = vsel %vm249, %v219, 0
          %253 = vmatprep.subr.mxu0 0.0
          %254 = vmatpush1.msra.mxu0 0.0
          %255 = vmatprep.subr.mxu0 0.0
          %256 = vmatpush1.msra.mxu0 0.0
          %257 = vmatprep.subr.mxu0 0.0
          %258 = vmatpush1.msra.mxu0 0.0
          %259 = vmatprep.subr.mxu0 0.0
          %260 = vmatpush1.msra.mxu0 0.0
          %261 = vmatprep.subr.mxu0 0.0
          %262 = vmatpush1.msra.mxu0 0.0
          %263 = vmatprep.subr.mxu0 0.0
          %264 = vmatpush1.msra.mxu0 0.0
          %265 = vmatprep.subr.mxu0 0.0
          %266 = vmatpush1.msra.mxu0 0.0
          %267 = vmatprep.subr.mxu0 0.0
          %268 = vmatpush1.msra.mxu0 0.0
          %269 = vmatprep.subr.mxu0 0.0
          %270 = vmatpush1.msra.mxu0 0.0
          %271 = vmatprep.subr.mxu0 0.0
          %272 = vmatpush1.msra.mxu0 0.0
          %273 = vmatprep.subr.mxu0 0.0
          %274 = vmatpush1.msra.mxu0 0.0
          %275 = vmatprep.subr.mxu0 0.0
          %276 = vmatpush1.msra.mxu0 0.0
          %277 = vmatprep.subr.mxu0 %v230
          %278 = vmatpush1.msra.mxu0 %v229
          %279 = vmatprep.subr.mxu0 %v227
          %280 = vmatpush1.msra.mxu0 %v226
          %281 = vmatprep.subr.mxu0 %v224
          %282 = vmatpush1.msra.mxu0 %v223
          %283 = vmatprep.subr.mxu0 %v221
          %284 = vmatpush1.msra.mxu0 %v220
          %285 = vmatprep.subr.mxu0 0.0
          %286 = vmatpush2.msra.mxu0 0.0
          %287 = vmatprep.subr.mxu0 0.0
          %288 = vmatpush2.msra.mxu0 0.0
          %289 = vmatprep.subr.mxu0 0.0
          %290 = vmatpush2.msra.mxu0 0.0
          %291 = vmatprep.subr.mxu0 0.0
          %292 = vmatpush2.msra.mxu0 0.0
          %293 = vmatprep.subr.mxu0 0.0
          %294 = vmatpush2.msra.mxu0 0.0
          %295 = vmatprep.subr.mxu0 0.0
          %296 = vmatpush2.msra.mxu0 0.0
          %297 = vmatprep.subr.mxu0 0.0
          %298 = vmatpush2.msra.mxu0 0.0
          %299 = vmatprep.subr.mxu0 0.0
          %300 = vmatpush2.msra.mxu0 0.0
          %301 = vmatprep.subr.mxu0 0.0
          %302 = vmatpush2.msra.mxu0 0.0
          %303 = vmatprep.subr.mxu0 0.0
          %304 = vmatpush2.msra.mxu0 0.0
          %305 = vmatprep.subr.mxu0 0.0
          %306 = vmatpush2.msra.mxu0 0.0
          %307 = vmatprep.subr.mxu0 0.0
          %308 = vmatpush2.msra.mxu0 0.0
          %309 = vmatprep.subr.mxu0 0.0
          %310 = vmatpush2.msra.mxu0 0.0
          %311 = vmatprep.subr.mxu0 0.0
          %312 = vmatpush2.msra.mxu0 0.0
          %313 = vmatprep.subr.mxu0 0.0
          %314 = vmatpush2.msra.mxu0 0.0
          %315 = vmatprep.subr.mxu0 0.0
          %316 = vmatpush2.msra.mxu0 0.0
          %317 = vmatprep.mubr.f32.mxu0 0.0
          %318 = vmatmul.mubr.f32.gmra.mxu0 %v251
          %v319 = vpop.f32.mrf.mxu0
          %v320 = vadd.f32 %v237, %v319
          %v321 = vpop.f32.mrf.mxu0
          %v322 = vadd.f32 %v241, %v321
          %323 = vdwg.mxu0
          %324 = vmatprep.subr.mxu0 0.0
          %325 = vmatpush1.msra.mxu0 0.0
          %326 = vmatprep.subr.mxu0 0.0
          %327 = vmatpush1.msra.mxu0 0.0
          %328 = vmatprep.subr.mxu0 0.0
          %329 = vmatpush1.msra.mxu0 0.0
          %330 = vmatprep.subr.mxu0 0.0
          %331 = vmatpush1.msra.mxu0 0.0
          %332 = vmatprep.subr.mxu0 0.0
          %333 = vmatpush1.msra.mxu0 0.0
          %334 = vmatprep.subr.mxu0 0.0
          %335 = vmatpush1.msra.mxu0 0.0
          %336 = vmatprep.subr.mxu0 0.0
          %337 = vmatpush1.msra.mxu0 0.0
          %338 = vmatprep.subr.mxu0 0.0
          %339 = vmatpush1.msra.mxu0 0.0
          %340 = vmatprep.subr.mxu0 0.0
          %341 = vmatpush1.msra.mxu0 0.0
          %342 = vmatprep.subr.mxu0 0.0
          %343 = vmatpush1.msra.mxu0 0.0
          %344 = vmatprep.subr.mxu0 0.0
          %345 = vmatpush1.msra.mxu0 0.0
          %346 = vmatprep.subr.mxu0 0.0
          %347 = vmatpush1.msra.mxu0 0.0
          %348 = vmatprep.subr.mxu0 0.0
          %349 = vmatpush1.msra.mxu0 %v231
          %350 = vmatprep.subr.mxu0 0.0
          %351 = vmatpush1.msra.mxu0 %v228
          %352 = vmatprep.subr.mxu0 0.0
          %353 = vmatpush1.msra.mxu0 %v225
          %354 = vmatprep.subr.mxu0 0.0
          %355 = vmatpush1.msra.mxu0 %v222
          %356 = vmatprep.subr.mxu0 0.0
          %357 = vmatpush2.msra.mxu0 0.0
          %358 = vmatprep.subr.mxu0 0.0
          %359 = vmatpush2.msra.mxu0 0.0
          %360 = vmatprep.subr.mxu0 0.0
          %361 = vmatpush2.msra.mxu0 0.0
          %362 = vmatprep.subr.mxu0 0.0
          %363 = vmatpush2.msra.mxu0 0.0
          %364 = vmatprep.subr.mxu0 0.0
          %365 = vmatpush2.msra.mxu0 0.0
          %366 = vmatprep.subr.mxu0 0.0
          %367 = vmatpush2.msra.mxu0 0.0
          %368 = vmatprep.subr.mxu0 0.0
          %369 = vmatpush2.msra.mxu0 0.0
          %370 = vmatprep.subr.mxu0 0.0
          %371 = vmatpush2.msra.mxu0 0.0
          %372 = vmatprep.subr.mxu0 0.0
          %373 = vmatpush2.msra.mxu0 0.0
          %374 = vmatprep.subr.mxu0 0.0
          %375 = vmatpush2.msra.mxu0 0.0
          %376 = vmatprep.subr.mxu0 0.0
          %377 = vmatpush2.msra.mxu0 0.0
          %378 = vmatprep.subr.mxu0 0.0
          %379 = vmatpush2.msra.mxu0 0.0
          %380 = vmatprep.subr.mxu0 0.0
          %381 = vmatpush2.msra.mxu0 0.0
          %382 = vmatprep.subr.mxu0 0.0
          %383 = vmatpush2.msra.mxu0 0.0
          %384 = vmatprep.subr.mxu0 0.0
          %385 = vmatpush2.msra.mxu0 0.0
          %386 = vmatprep.subr.mxu0 0.0
          %387 = vmatpush2.msra.mxu0 0.0
          %388 = vmatprep.mubr.f32.mxu0 0.0
          %389 = vmatmul.mubr.f32.gmra.mxu0 %v251
          %v390 = vpop.f32.mrf.mxu0
          %v391 = vadd.f32 %v245, %v390
          %v392 = vpop.f32.mrf.mxu0
          %393 = vdwg.mxu0
          %394 = vst [vmem:[#allocation2] sm:$0xff] %v320
          %395 = vst [vmem:[#allocation2 + $0x8] sm:$0xff] %v322
          %396 = vst [vmem:[#allocation2 + $0x10] sm:$0xff] %v391
        $region44: #{tpu_custom_call.1} parent=31 // pred_fallthru
          _
        %s397 = smul.u32 %s26, 8
        %s398 = sshra.s32 %s397, 3
        %s399 = sand.u32 %s397, 7
        %s400 = smul.u32 %s398, 3
        %s401 = smul.addr %s400, 8
        %s402 = scalar_lea.vmem [#allocation2], %s401
        %v403 = vld [vmem:[%s402] sm:$0xff]
        %v404 = vld [vmem:[#allocation2 + $0x8] sm:$0xff]
        %v405 = vld [vmem:[#allocation2 + $0x10] sm:$0xff]
        %406 = vmatprep.subr.mxu0 0.0
        %407 = vmatpush1.xpose.msra.mxu0 0.0
        %408 = vmatprep.subr.mxu0 0.0
        %409 = vmatpush1.xpose.msra.mxu0 0.0
        %410 = vmatprep.subr.mxu0 0.0
        %411 = vmatpush1.xpose.msra.mxu0 0.0
        %412 = vmatprep.subr.mxu0 0.0
        %413 = vmatpush1.xpose.msra.mxu0 0.0
        %414 = vmatprep.subr.mxu0 0.0
        %415 = vmatpush1.xpose.msra.mxu0 0.0
        %416 = vmatprep.subr.mxu0 0.0
        %417 = vmatpush1.xpose.msra.mxu0 0.0
        %418 = vmatprep.subr.mxu0 0.0
        %419 = vmatpush1.xpose.msra.mxu0 0.0
        %420 = vmatprep.subr.mxu0 0.0
        %421 = vmatpush1.xpose.msra.mxu0 0.0
        %422 = vmatprep.subr.mxu0 0.0
        %423 = vmatpush1.xpose.msra.mxu0 0.0
        %424 = vmatprep.subr.mxu0 0.0
        %425 = vmatpush1.xpose.msra.mxu0 0.0
        %426 = vmatprep.subr.mxu0 0.0
        %427 = vmatpush1.xpose.msra.mxu0 0.0
        %428 = vmatprep.subr.mxu0 0.0
        %429 = vmatpush1.xpose.msra.mxu0 0.0
        %430 = vmatprep.subr.mxu0 0.0
        %431 = vmatpush1.xpose.msra.mxu0 0.0
        %432 = vmatprep.subr.mxu0 0.0
        %433 = vmatpush1.xpose.msra.mxu0 0.0
        %434 = vmatprep.subr.mxu0 0.0
        %435 = vmatpush1.xpose.msra.mxu0 0.0
        %436 = vmatprep.subr.mxu0 0.0
        %437 = vmatpush1.xpose.msra.mxu0 %v404
        %438 = vmatprep.subr.mxu0 0.0
        %439 = vmatpush2.xpose.msra.mxu0 0.0
        %440 = vmatprep.subr.mxu0 0.0
        %441 = vmatpush2.xpose.msra.mxu0 0.0
        %442 = vmatprep.subr.mxu0 0.0
        %443 = vmatpush2.xpose.msra.mxu0 0.0
        %444 = vmatprep.subr.mxu0 0.0
        %445 = vmatpush2.xpose.msra.mxu0 0.0
        %446 = vmatprep.subr.mxu0 0.0
        %447 = vmatpush2.xpose.msra.mxu0 0.0
        %448 = vmatprep.subr.mxu0 0.0
        %449 = vmatpush2.xpose.msra.mxu0 0.0
        %450 = vmatprep.subr.mxu0 0.0
        %451 = vmatpush2.xpose.msra.mxu0 0.0
        %452 = vmatprep.subr.mxu0 0.0
        %453 = vmatpush2.xpose.msra.mxu0 0.0
        %454 = vmatprep.subr.mxu0 0.0
        %455 = vmatpush2.xpose.msra.mxu0 0.0
        %456 = vmatprep.subr.mxu0 0.0
        %457 = vmatpush2.xpose.msra.mxu0 0.0
        %458 = vmatprep.subr.mxu0 0.0
        %459 = vmatpush2.xpose.msra.mxu0 0.0
        %460 = vmatprep.subr.mxu0 0.0
        %461 = vmatpush2.xpose.msra.mxu0 0.0
        %462 = vmatprep.subr.mxu0 0.0
        %463 = vmatpush2.xpose.msra.mxu0 0.0
        %464 = vmatprep.subr.mxu0 0.0
        %465 = vmatpush2.xpose.msra.mxu0 0.0
        %466 = vmatprep.subr.mxu0 0.0
        %467 = vmatpush2.xpose.msra.mxu0 0.0
        %468 = vmatprep.subr.mxu0 0.0
        %469 = vmatpush2.xpose.msra.mxu0 0.0
        %470 = vmatprep.mubr.f32.mxu0 0.0
        %471 = vmatmul.mubr.f32.gmra.mxu0 %v403
        %v472 = vpop.f32.mrf.mxu0
        %v473 = vadd.f32 0.0, %v472
        %v474 = vpop.f32.mrf.mxu0
        %475 = vdwg.mxu0
        %vm476 = vcmask 64512
        %v477 = vsel %vm476, %v473, -inf
        %478 = vmax.xlane.f32.xlu0 %v477
        %v479 = vpop.xlane.xlu0 %478
        %v480 = vsub.f32 %v473, %v479
        %v481 = vmul.f32 %v480, 1.442695
        %v482 = vpow.pop %v481
        %v483 = vsel %vm476, %v482, 0.0
        %484 = vadd.xlane.f32.xlu0 %v483
        %v485 = vpop.xlane.xlu0 %484
        %v487 = vsel %vm476, %v482, 0
        %489 = vmatprep.subr.mxu0 0.0
        %490 = vmatpush1.msra.mxu0 0.0
        %491 = vmatprep.subr.mxu0 0.0
        %492 = vmatpush1.msra.mxu0 0.0
        %493 = vmatprep.subr.mxu0 0.0
        %494 = vmatpush1.msra.mxu0 0.0
        %495 = vmatprep.subr.mxu0 0.0
        %496 = vmatpush1.msra.mxu0 0.0
        %497 = vmatprep.subr.mxu0 0.0
        %498 = vmatpush1.msra.mxu0 0.0
        %499 = vmatprep.subr.mxu0 0.0
        %500 = vmatpush1.msra.mxu0 0.0
        %501 = vmatprep.subr.mxu0 0.0
        %502 = vmatpush1.msra.mxu0 0.0
        %503 = vmatprep.subr.mxu0 0.0
        %504 = vmatpush1.msra.mxu0 0.0
        %505 = vmatprep.subr.mxu0 0.0
        %506 = vmatpush1.msra.mxu0 0.0
        %507 = vmatprep.subr.mxu0 0.0
        %508 = vmatpush1.msra.mxu0 0.0
        %509 = vmatprep.subr.mxu0 0.0
        %510 = vmatpush1.msra.mxu0 0.0
        %511 = vmatprep.subr.mxu0 0.0
        %512 = vmatpush1.msra.mxu0 0.0
        %513 = vmatprep.subr.mxu0 0.0
        %514 = vmatpush1.msra.mxu0 0.0
        %515 = vmatprep.subr.mxu0 0.0
        %516 = vmatpush1.msra.mxu0 0.0
        %517 = vmatprep.subr.mxu0 0.0
        %518 = vmatpush1.msra.mxu0 0.0
        %519 = vmatprep.subr.mxu0 0.0
        %520 = vmatpush1.msra.mxu0 %v405
        %521 = vmatprep.subr.mxu0 0.0
        %522 = vmatpush2.msra.mxu0 0.0
        %523 = vmatprep.subr.mxu0 0.0
        %524 = vmatpush2.msra.mxu0 0.0
        %525 = vmatprep.subr.mxu0 0.0
        %526 = vmatpush2.msra.mxu0 0.0
        %527 = vmatprep.subr.mxu0 0.0
        %528 = vmatpush2.msra.mxu0 0.0
        %529 = vmatprep.subr.mxu0 0.0
        %530 = vmatpush2.msra.mxu0 0.0
        %531 = vmatprep.subr.mxu0 0.0
        %532 = vmatpush2.msra.mxu0 0.0
        %533 = vmatprep.subr.mxu0 0.0
        %534 = vmatpush2.msra.mxu0 0.0
        %535 = vmatprep.subr.mxu0 0.0
        %536 = vmatpush2.msra.mxu0 0.0
        %537 = vmatprep.subr.mxu0 0.0
        %538 = vmatpush2.msra.mxu0 0.0
        %539 = vmatprep.subr.mxu0 0.0
        %540 = vmatpush2.msra.mxu0 0.0
        %541 = vmatprep.subr.mxu0 0.0
        %542 = vmatpush2.msra.mxu0 0.0
        %543 = vmatprep.subr.mxu0 0.0
        %544 = vmatpush2.msra.mxu0 0.0
        %545 = vmatprep.subr.mxu0 0.0
        %546 = vmatpush2.msra.mxu0 0.0
        %547 = vmatprep.subr.mxu0 0.0
        %548 = vmatpush2.msra.mxu0 0.0
        %549 = vmatprep.subr.mxu0 0.0
        %550 = vmatpush2.msra.mxu0 0.0
        %551 = vmatprep.subr.mxu0 0.0
        %552 = vmatpush2.msra.mxu0 0.0
        %553 = vmatprep.mubr.f32.mxu0 0.0
        %554 = vmatmul.mubr.f32.gmra.mxu0 %v487
        %v555 = vpop.f32.mrf.mxu0
        %v556 = vadd.f32 0.0, %v555
        %v557 = vpop.f32.mrf.mxu0
        %558 = vdwg.mxu0
        %v559 = vrcp.pop %v485
        %v560 = vmul.f32 %v556, %v559
        %561 = vst [vmem:[%s214] sm:$0xff] %v560
        %s562 = sand.u32 %s111, 1
        %s563 = scalar_lea.sflag [#allocation5], %s562
        %s564 = sand.u32 %s111, 1
        %s565 = smul.addr %s564, 8
        %s566 = scalar_lea.vmem [#allocation8], %s565
        // Predicated region
        $region45: #{tpu_custom_call.1} parent=31 // pred_check
          %p567 = pneg %p121
        $region46: #{tpu_custom_call.1} parent=31 // pred_check_branch
          %569 = sbr.rel (%p567) target = $region48
        $region47: #{tpu_custom_call.1} parent=31 // pred_region
          %s571 = ssub.s32 128, 128
          %572 = vsyncadd %s563, %s571
          %s573 = sadd.s32 %s26, %s25
          %s574 = smul.addr %s573, 128
          %s575 = scalar_lea.hbm %s3, %s574
          %s577 = sshll.u32 %s566, 4
          %s578 = int_to_ptr.vmem [resolvable:$true] %s577
          %580 = dma.vmem_to_hbm [thread:$0]  %s578, 128, %s575, %s563
        $region48: #{tpu_custom_call.1} parent=31 // pred_fallthru
          _
      $region32: #{tpu_custom_call.1} parent=5 // pred_fallthru
        _
      %p581 = scmp.le.s32.totalorder 2, %s16
      // Predicated region
      $region49: #{tpu_custom_call.1} parent=5 // pred_check
        %p582 = pneg %p581
      $region50: #{tpu_custom_call.1} parent=5 // pred_check_branch
        %584 = sbr.rel (%p582) target = $region52
      $region51: #{tpu_custom_call.1} parent=5 // pred_region
        %s585 = ssub.s32 %s16, 2
        // Predicated region
        $region53: #{tpu_custom_call.1} parent=51 // pred_check
          %p586 = pneg %p127
        $region54: #{tpu_custom_call.1} parent=51 // pred_check_branch
          %588 = sbr.rel (%p586) target = $region56
        $region55: #{tpu_custom_call.1} parent=51 // pred_region
          %s589 = sand.u32 %s112, 1
          %s590 = scalar_lea.sflag [#allocation5], %s589
          %s591 = sand.u32 %s112, 1
          %s592 = smul.addr %s591, 8
          %s593 = scalar_lea.vmem [#allocation8], %s592
          %594 = dma.done %s590, 128
        $region56: #{tpu_custom_call.1} parent=51 // pred_fallthru
          _
      $region52: #{tpu_custom_call.1} parent=5 // pred_fallthru
        _
    $region6: #{tpu_custom_call.1} parent=1 // loop_footer
      %s20 = sadd.s32 1, %s16
    $region7: #{tpu_custom_call.1} parent=1 // loop_footer_branch
      %15 = sbr.rel target = $region3
    $region8: #{tpu_custom_call.1} parent=1 // loop_exit
      _
    %595 = vsyncpa [#allocation4], 1
    %s596 = scalar_lea.sflag [#allocation4], 1
    %597 = vsyncpa %s596, 1
    %598 = vsyncpa [#allocation7], 1
    %599 = vsyncpa [#allocation5], 1
    %s600 = scalar_lea.sflag [#allocation5], 1
    %601 = vsyncpa %s600, 1

</llo_original>
